<compile_context>
chip_gen: v7x
topology: tpu7x:2x2x1
jax: 0.10.0
libtpu: 0.0.40
codegen_flags: <defaults>
</compile_context>

<pallas_src>
import jax
import jax.numpy as jnp
from jax.experimental import pallas as pl
from jax.experimental.pallas import tpu as pltpu

_LANE = 128


def _pick_block_b(B):
    """Largest batch tile (capped at 256) dividing B while keeping >= 2 grid
    points (v7x megacore); falls back to a single full-batch tile."""
    for tb in (256, 128, 64, 32, 16, 8):
        if B % tb == 0 and B // tb >= 2:
            return tb
    for tb in (256, 128, 64, 32, 16, 8):
        if B % tb == 0:
            return tb
    return B


def _vmem_limit_bytes(block_b, x_dims, layer_args):
    """Explicit scoped-VMEM budget: double-buffered inputs/params/output plus
    headroom for the compiler-managed activation temporaries."""
    in_tile = sum(block_b * d * 4 for d in x_dims)            # f32 input tiles
    param_bytes = sum(int(p.size) * p.dtype.itemsize for p in layer_args)
    out_tile = block_b * 4
    widest = max(p.shape[-1] for p in layer_args)
    act_tile = block_b * max(widest, _LANE) * 4
    total = 2 * (in_tile + param_bytes + out_tile) + 8 * act_tile + (1 << 20)
    return int(min(max(total, 16 << 20), 64 << 20))


def _make_kernel(n_layers, has_x2, activate_final):
    """Fused-MLP kernel body for a fixed layer count / input arity."""
    n_x = 2 if has_x2 else 1

    def nt_dot(w_row, act):
        # (1, K) x (M, K) -> (1, M): contract over the last dim of both
        # operands (MXU-native NT pattern); f32 accumulation.
        return jax.lax.dot_general(
            w_row, act, (((1,), (1,)), ((), ())),
            preferred_element_type=jnp.float32)

    def kernel(*refs):
        x_refs = refs[:n_x]
        param_refs = refs[n_x:-1]
        out_ref = refs[-1]                       # (1, block_b) f32, lane-dense

        # DMA'd in native dtype; cast to bf16 in-kernel (no wrapper .astype).
        x1 = x_refs[0][...].astype(jnp.bfloat16)
        x2 = x_refs[1][...].astype(jnp.bfloat16) if has_x2 else None

        idx = 0
        h = None
        if n_layers > 1:
            # ---- layer 0 (concat-free split-weight form) -------------------
            if has_x2:
                w1a, w1b, b1 = (param_refs[0][...], param_refs[1][...],
                                param_refs[2][...])
                idx = 3
                h = (jnp.dot(x1, w1a, preferred_element_type=jnp.float32)
                     + jnp.dot(x2, w1b, preferred_element_type=jnp.float32)
                     + b1)
            else:
                h = (jnp.dot(x1, param_refs[0][...],
                             preferred_element_type=jnp.float32)
                     + param_refs[1][...])
                idx = 2
            h = jnp.maximum(h, 0.0).astype(jnp.bfloat16)   # fused ReLU + cast

            # ---- hidden layers 1 .. n-2 ------------------------------------
            for _ in range(1, n_layers - 1):
                w, b = param_refs[idx][...], param_refs[idx + 1][...]
                idx += 2
                h = jnp.dot(h, w, preferred_element_type=jnp.float32) + b
                h = jnp.maximum(h, 0.0).astype(jnp.bfloat16)

        # ---- final layer -> lane-dense (1, block_b) row --------------------
        if n_layers == 1:
            if has_x2:
                wa, wb, b = (param_refs[0][...], param_refs[1][...],
                             param_refs[2][...])
                row = nt_dot(wa, x1) + nt_dot(wb, x2) + b
            else:
                row = nt_dot(param_refs[0][...], x1) + param_refs[1][...]
        else:
            w, b = param_refs[idx][...], param_refs[idx + 1][...]
            row = nt_dot(w, h) + b
        if activate_final:
            row = jnp.maximum(row, 0.0)
        out_ref[...] = row

    return kernel


def prepare_params(params, *, split_at=None, weight_dtype=jnp.bfloat16):
    """One-time (outside the hot path) conversion of f32 (in, out)/(1, out)
    params into the kernel layout: bf16 weights, first layer split at
    `split_at` (concat-free), last layer stored as a (1, H) row + (1, 1) bias."""
    weights, biases = params["weights"], params["biases"]
    n = len(weights)
    assert n >= 1 and len(biases) == n
    assert weights[-1].shape[-1] == 1, "final layer maps to a single output"
    layer_args = []
    for li in range(n):
        w = jnp.asarray(weights[li])
        b = jnp.asarray(biases[li]).reshape(1, -1).astype(jnp.float32)
        last = li == n - 1
        parts = ([w[:split_at], w[split_at:]]
                 if (li == 0 and split_at is not None) else [w])
        for p in parts:
            p = p.astype(weight_dtype)
            layer_args.append(p.T if last else p)   # last layer as (1, in) row
        layer_args.append(b)
    return {"layer_args": tuple(layer_args), "n_layers": n, "split_at": split_at}


def fully_connected_net_forward(x1, x2, prepared, *, activate_final=False,
                                block_b=None):
    """Forward pass. Returns (B, 1) float32 logits."""
    layer_args = prepared["layer_args"]
    n_layers = prepared["n_layers"]
    split_at = prepared["split_at"]
    has_x2 = x2 is not None
    if has_x2:
        assert split_at is not None and split_at == x1.shape[1], \
            "prepare_params(split_at=x1_dim) required when x2 is provided"
    else:
        assert split_at is None, "params were split for x2 but x2 is None"

    B, d1 = x1.shape
    if block_b is None:
        block_b = _pick_block_b(B)
    assert B % block_b == 0
    grid = B // block_b

    args = [x1]
    in_specs = [pl.BlockSpec((block_b, d1), lambda i: (i, 0))]
    x_dims = [d1]
    if has_x2:
        d2 = x2.shape[1]
        args.append(x2)
        in_specs.append(pl.BlockSpec((block_b, d2), lambda i: (i, 0)))
        x_dims.append(d2)
    for p in layer_args:
        args.append(p)
        in_specs.append(pl.BlockSpec(p.shape, lambda i: (0, 0)))

    kernel = _make_kernel(n_layers, has_x2, activate_final)
    vmem_limit = _vmem_limit_bytes(block_b, x_dims, layer_args)

    out3 = pl.pallas_call(
        kernel,
        out_shape=jax.ShapeDtypeStruct((grid, 1, block_b), jnp.float32),
        grid_spec=pltpu.PrefetchScalarGridSpec(
            num_scalar_prefetch=0,
            grid=(grid,),
            in_specs=in_specs,
            out_specs=pl.BlockSpec((None, 1, block_b), lambda i: (i, 0, 0)),
        ),
        compiler_params=pltpu.CompilerParams(
            dimension_semantics=("parallel",),
            vmem_limit_bytes=vmem_limit),
    )(*args)

    return out3.reshape(B, 1)


def init_params(key, input_dim, hidden_dims):
    """PyTorch nn.Linear-style uniform init; weights stored as (in, out)."""
    dims = [input_dim] + list(hidden_dims) + [1]
    n = len(dims) - 1
    ks = jax.random.split(key, 2 * n)
    weights, biases = [], []
    for i in range(n):
        fan_in, fan_out = dims[i], dims[i + 1]
        bound = 1.0 / float(fan_in) ** 0.5
        weights.append(jax.random.uniform(ks[2 * i], (fan_in, fan_out),
                                          jnp.float32, -bound, bound))
        biases.append(jax.random.uniform(ks[2 * i + 1], (1, fan_out),
                                         jnp.float32, -bound, bound))
    return {"weights": weights, "biases": biases}


def _reference(x1, x2, params, activate_final=False):
    """Pure-JAX reference with the same bf16-operand / f32-accumulate math."""
    x = x1 if x2 is None else jnp.concatenate([x1, x2], axis=-1)
    n = len(params["weights"])
    h = x
    for i, (w, b) in enumerate(zip(params["weights"], params["biases"])):
        h = jnp.dot(h.astype(jnp.bfloat16), w.astype(jnp.bfloat16),
                    preferred_element_type=jnp.float32) + b
        if i < n - 1 or activate_final:
            h = jnp.maximum(h, 0.0)
    return h


if __name__ == "__main__":
    B = 512
    D1, D2 = 32, 32
    HIDDEN = (128, 128)

    key = jax.random.PRNGKey(0)
    k_x1, k_x2, k_p = jax.random.split(key, 3)
    x1 = jax.random.normal(k_x1, (B, D1), jnp.float32)
    x2 = jax.random.normal(k_x2, (B, D2), jnp.float32)
    params = init_params(k_p, D1 + D2, HIDDEN)

    # One-time param preparation (bf16 cast / split / last-row transpose) —
    # kept out of the per-call hot path on purpose.
    prepared = prepare_params(params, split_at=D1)

    out = fully_connected_net_forward(x1, x2, prepared)
    jax.block_until_ready(out)
    ref = _reference(x1, x2, params)
    assert out.shape == (B, 1)
    assert jnp.allclose(out, ref, atol=2e-3, rtol=2e-3), \
        float(jnp.max(jnp.abs(out - ref)))

    # Also exercise the x2=None path (pre-concatenated input, small batch).
    prepared1 = prepare_params(params)
    x_cat = jnp.concatenate([x1, x2], axis=-1)[:16]
    out1 = fully_connected_net_forward(x_cat, None, prepared1)
    jax.block_until_ready(out1)
    ref1 = _reference(x_cat, None, params)
    assert out1.shape == (16, 1)
    assert jnp.allclose(out1, ref1, atol=2e-3, rtol=2e-3), \
        float(jnp.max(jnp.abs(out1 - ref1)))

    print("KERNEL_OK")
</pallas_src>

<mosaic_0001>
module attributes {stable_mosaic.version = 11 : i64} {
  func.func @kernel(%arg0: i32, %arg1: memref<256x32xf32, #tpu.memory_space<vmem>>, %arg2: memref<256x32xf32, #tpu.memory_space<vmem>>, %arg3: memref<32x128xbf16, #tpu.memory_space<vmem>>, %arg4: memref<32x128xbf16, #tpu.memory_space<vmem>>, %arg5: memref<1x128xf32, #tpu.memory_space<vmem>>, %arg6: memref<128x128xbf16, #tpu.memory_space<vmem>>, %arg7: memref<1x128xf32, #tpu.memory_space<vmem>>, %arg8: memref<1x128xbf16, #tpu.memory_space<vmem>>, %arg9: memref<1x1xf32, #tpu.memory_space<vmem>>, %arg10: memref<1x1x256xf32, #tpu.memory_space<vmem>>) attributes {dimension_semantics = [#tpu.dimension_semantics<parallel>], iteration_bounds = array<i64: 2>, scalar_prefetch = 0 : i64, scratch_operands = 0 : i64, tpu.core_type = #tpu.core_type<tc>, window_params = [{transform_indices = @transform_0, window_bounds = array<i64: 256, 32>}, {transform_indices = @transform_1, window_bounds = array<i64: 256, 32>}, {pipeline_mode = #tpu.pipeline_mode<synchronous>, transform_indices = @transform_2, window_bounds = array<i64: 32, 128>}, {pipeline_mode = #tpu.pipeline_mode<synchronous>, transform_indices = @transform_3, window_bounds = array<i64: 32, 128>}, {pipeline_mode = #tpu.pipeline_mode<synchronous>, transform_indices = @transform_4, window_bounds = array<i64: 1, 128>}, {pipeline_mode = #tpu.pipeline_mode<synchronous>, transform_indices = @transform_5, window_bounds = array<i64: 128, 128>}, {pipeline_mode = #tpu.pipeline_mode<synchronous>, transform_indices = @transform_6, window_bounds = array<i64: 1, 128>}, {pipeline_mode = #tpu.pipeline_mode<synchronous>, transform_indices = @transform_7, window_bounds = array<i64: 1, 128>}, {pipeline_mode = #tpu.pipeline_mode<synchronous>, transform_indices = @transform_8, window_bounds = array<i64: 1, 1>}, {transform_indices = @transform_9, window_bounds = array<i64: 1, 1, 256>}]} {
    %c0 = arith.constant 0 : index
    %c0_0 = arith.constant 0 : index
    %0 = vector.load %arg1[%c0, %c0_0] : memref<256x32xf32, #tpu.memory_space<vmem>>, vector<256x32xf32>
    %1 = arith.truncf %0 : vector<256x32xf32> to vector<256x32xbf16>
    %c0_1 = arith.constant 0 : index
    %c0_2 = arith.constant 0 : index
    %2 = vector.load %arg2[%c0_1, %c0_2] : memref<256x32xf32, #tpu.memory_space<vmem>>, vector<256x32xf32>
    %3 = arith.truncf %2 : vector<256x32xf32> to vector<256x32xbf16>
    %c0_3 = arith.constant 0 : index
    %c0_4 = arith.constant 0 : index
    %4 = vector.load %arg3[%c0_3, %c0_4] : memref<32x128xbf16, #tpu.memory_space<vmem>>, vector<32x128xbf16>
    %c0_5 = arith.constant 0 : index
    %c0_6 = arith.constant 0 : index
    %5 = vector.load %arg4[%c0_5, %c0_6] : memref<32x128xbf16, #tpu.memory_space<vmem>>, vector<32x128xbf16>
    %c0_7 = arith.constant 0 : index
    %c0_8 = arith.constant 0 : index
    %6 = vector.load %arg5[%c0_7, %c0_8] : memref<1x128xf32, #tpu.memory_space<vmem>>, vector<1x128xf32>
    %cst = arith.constant dense<0.000000e+00> : vector<256x128xf32>
    %7 = tpu.matmul %1, %4, %cst {dimension_numbers = #tpu.dot_dimension_numbers<[1], [0], [0], [1], [0, 0, 1, 1], [], []>} : vector<256x32xbf16>, vector<32x128xbf16>, vector<256x128xf32> -> vector<256x128xf32>
    %cst_9 = arith.constant dense<0.000000e+00> : vector<256x128xf32>
    %8 = tpu.matmul %3, %5, %cst_9 {dimension_numbers = #tpu.dot_dimension_numbers<[1], [0], [0], [1], [0, 0, 1, 1], [], []>} : vector<256x32xbf16>, vector<32x128xbf16>, vector<256x128xf32> -> vector<256x128xf32>
    %9 = arith.addf %7, %8 : vector<256x128xf32>
    %10 = vector.broadcast %6 : vector<1x128xf32> to vector<256x128xf32>
    %11 = arith.addf %9, %10 : vector<256x128xf32>
    %cst_10 = arith.constant 0.000000e+00 : f32
    %12 = vector.broadcast %cst_10 : f32 to vector<256x128xf32>
    %13 = arith.maximumf %11, %12 : vector<256x128xf32>
    %14 = arith.truncf %13 : vector<256x128xf32> to vector<256x128xbf16>
    %c0_11 = arith.constant 0 : index
    %c0_12 = arith.constant 0 : index
    %15 = vector.load %arg6[%c0_11, %c0_12] : memref<128x128xbf16, #tpu.memory_space<vmem>>, vector<128x128xbf16>
    %c0_13 = arith.constant 0 : index
    %c0_14 = arith.constant 0 : index
    %16 = vector.load %arg7[%c0_13, %c0_14] : memref<1x128xf32, #tpu.memory_space<vmem>>, vector<1x128xf32>
    %cst_15 = arith.constant dense<0.000000e+00> : vector<256x128xf32>
    %17 = tpu.matmul %14, %15, %cst_15 {dimension_numbers = #tpu.dot_dimension_numbers<[1], [0], [0], [1], [0, 0, 1, 1], [], []>} : vector<256x128xbf16>, vector<128x128xbf16>, vector<256x128xf32> -> vector<256x128xf32>
    %18 = vector.broadcast %16 : vector<1x128xf32> to vector<256x128xf32>
    %19 = arith.addf %17, %18 : vector<256x128xf32>
    %cst_16 = arith.constant 0.000000e+00 : f32
    %20 = vector.broadcast %cst_16 : f32 to vector<256x128xf32>
    %21 = arith.maximumf %19, %20 : vector<256x128xf32>
    %22 = arith.truncf %21 : vector<256x128xf32> to vector<256x128xbf16>
    %c0_17 = arith.constant 0 : index
    %c0_18 = arith.constant 0 : index
    %23 = vector.load %arg8[%c0_17, %c0_18] : memref<1x128xbf16, #tpu.memory_space<vmem>>, vector<1x128xbf16>
    %c0_19 = arith.constant 0 : index
    %c0_20 = arith.constant 0 : index
    %24 = vector.load %arg9[%c0_19, %c0_20] : memref<1x1xf32, #tpu.memory_space<vmem>>, vector<1x1xf32>
    %cst_21 = arith.constant dense<0.000000e+00> : vector<1x256xf32>
    %25 = tpu.matmul %23, %22, %cst_21 {dimension_numbers = #tpu.dot_dimension_numbers<[1], [1], [0], [0], [0, 0, 1, 0], [], []>} : vector<1x128xbf16>, vector<256x128xbf16>, vector<1x256xf32> -> vector<1x256xf32>
    %26 = vector.broadcast %24 : vector<1x1xf32> to vector<1x256xf32>
    %27 = arith.addf %25, %26 : vector<1x256xf32>
    %c0_22 = arith.constant 0 : index
    %c0_23 = arith.constant 0 : index
    %c0_24 = arith.constant 0 : index
    %28 = vector.load %arg10[%c0_22, %c0_23, %c0_24] : memref<1x1x256xf32, #tpu.memory_space<vmem>>, vector<1x1x256xf32>
    %29 = vector.shape_cast %28 : vector<1x1x256xf32> to vector<1x256xf32>
    %30 = vector.shape_cast %27 : vector<1x256xf32> to vector<1x1x256xf32>
    tpu.vector_store %arg10[%c0_22, %c0_23, %c0_24], %30 {strides = array<i32>} : memref<1x1x256xf32, #tpu.memory_space<vmem>>, vector<1x1x256xf32>,
    return
  }
  func.func @transform_0(%arg0: i32) -> (i32, i32) {
    %c0_i32 = arith.constant 0 : i32
    %c0_i32_0 = arith.constant 0 : i32
    return %arg0, %c0_i32 : i32, i32
  }
  func.func @transform_1(%arg0: i32) -> (i32, i32) {
    %c0_i32 = arith.constant 0 : i32
    %c0_i32_0 = arith.constant 0 : i32
    return %arg0, %c0_i32 : i32, i32
  }
  func.func @transform_2(%arg0: i32) -> (i32, i32) {
    %c0_i32 = arith.constant 0 : i32
    %c0_i32_0 = arith.constant 0 : i32
    %c0_i32_1 = arith.constant 0 : i32
    return %c0_i32, %c0_i32_0 : i32, i32
  }
  func.func @transform_3(%arg0: i32) -> (i32, i32) {
    %c0_i32 = arith.constant 0 : i32
    %c0_i32_0 = arith.constant 0 : i32
    %c0_i32_1 = arith.constant 0 : i32
    return %c0_i32, %c0_i32_0 : i32, i32
  }
  func.func @transform_4(%arg0: i32) -> (i32, i32) {
    %c0_i32 = arith.constant 0 : i32
    %c0_i32_0 = arith.constant 0 : i32
    %c0_i32_1 = arith.constant 0 : i32
    return %c0_i32, %c0_i32_0 : i32, i32
  }
  func.func @transform_5(%arg0: i32) -> (i32, i32) {
    %c0_i32 = arith.constant 0 : i32
    %c0_i32_0 = arith.constant 0 : i32
    %c0_i32_1 = arith.constant 0 : i32
    return %c0_i32, %c0_i32_0 : i32, i32
  }
  func.func @transform_6(%arg0: i32) -> (i32, i32) {
    %c0_i32 = arith.constant 0 : i32
    %c0_i32_0 = arith.constant 0 : i32
    %c0_i32_1 = arith.constant 0 : i32
    return %c0_i32, %c0_i32_0 : i32, i32
  }
  func.func @transform_7(%arg0: i32) -> (i32, i32) {
    %c0_i32 = arith.constant 0 : i32
    %c0_i32_0 = arith.constant 0 : i32
    %c0_i32_1 = arith.constant 0 : i32
    return %c0_i32, %c0_i32_0 : i32, i32
  }
  func.func @transform_8(%arg0: i32) -> (i32, i32) {
    %c0_i32 = arith.constant 0 : i32
    %c0_i32_0 = arith.constant 0 : i32
    %c0_i32_1 = arith.constant 0 : i32
    return %c0_i32, %c0_i32_0 : i32, i32
  }
  func.func @transform_9(%arg0: i32) -> (i32, i32, i32) {
    %c0_i32 = arith.constant 0 : i32
    %c0_i32_0 = arith.constant 0 : i32
    %c0_i32_1 = arith.constant 0 : i32
    return %arg0, %c0_i32, %c0_i32_0 : i32, i32, i32
  }
}

</mosaic_0001>

<llo_original>
// kernel: tpu_custom_call.1
$region0: #{tpu_custom_call.1}
  #allocation0 [shape = 'u32[]', space=smem, size = 0x4, offset = 0x4, fixed_abs, tag = 'smem constant byte address 0x4 - core index']
  #allocation1 [shape = 'u32[144,128]{1,0:T(1,128)}', space=vmem, size = 0x12000, scoped, tag = 'internal scratch']
  #allocation2 [shape = 'f32[1,1]{1,0:T(1,128)S(1)}', space=vmem, size = 0x200, scoped, tag = 'scoped memory for tpu_custom_call.1']
  %s0 = inlined_call_operand.vmem [shape: f32[512,32], index: 0, kind: input, shape index: {}]
  %s1 = inlined_call_operand.vmem [shape: f32[512,32], index: 1, kind: input, shape index: {}]
  %s2 = inlined_call_operand.vmem [shape: bf16[32,128], index: 2, kind: input, shape index: {}]
  %s3 = inlined_call_operand.vmem [shape: bf16[32,128], index: 3, kind: input, shape index: {}]
  %s4 = inlined_call_operand.vmem [shape: f32[1,128], index: 4, kind: input, shape index: {}]
  %s5 = inlined_call_operand.vmem [shape: bf16[128,128], index: 5, kind: input, shape index: {}]
  %s6 = inlined_call_operand.vmem [shape: f32[1,128], index: 6, kind: input, shape index: {}]
  %s7 = inlined_call_operand.vmem [shape: bf16[1,128], index: 7, kind: input, shape index: {}]
  %s8 = inlined_call_operand.<no memory space> [shape: f32[1,1], index: 8, kind: input, shape index: {}]
  %s9 = inlined_call_operand.hbm [shape: f32[2,1,256], index: 9, kind: output, shape index: {}]
  %s10 = sld [smem:[#allocation0]]
  $region69: #{tpu_custom_call.1} parent=0
    _
  %s12 = ssub.s32 1, %s10
  %s13 = scalar_select 0, %s12, %s10
  %v14 = vstv %s8
  %15 = vst [vmem:[#allocation2] sm:$0x1] %v14
  $region1: #{tpu_custom_call.1} parent=0
    #allocation3 [shape = 'u8[2048]{0}', space=vmem, size = 0x800, scoped, tag = 'output window, operand 0']
    #allocation4 [shape = 's32[2]{0}', space=sflag, size = 0x8, scoped, tag = 'scoped memory for tpu_custom_call.1']
    %16 = vsyncpa [#allocation4], 0
    %s17 = scalar_lea.sflag [#allocation4], 1
    %18 = vsyncpa %s17, 0
    loop: start=0, step=1, limit=4
    $region2: #{tpu_custom_call.1} parent=1 // loop_pre_header
      _
    $region3: #{tpu_custom_call.1} parent=1 // loop_header
      %s20 = sphi 0, %s24
      %p21 = scmp.ge.s32.totalorder %s20, 4
      %s30 = sphi 0, %s32
      %s33 = sphi 0, %s30
      %s34 = sphi 0, %s33
      %s50 = sphi 0, %s34
      %s56 = sphi 0, %s58
      %s59 = sphi 0, %s56
      %s60 = sphi 0, %s59
      %s76 = sphi 0, %s60
      %s80 = sphi 0, %s80
      %s82 = sphi 0, %s80
      %s83 = sphi 0, %s82
      %s97 = sphi 0, %s83
      %s101 = sphi 0, %s101
      %s103 = sphi 0, %s101
      %s104 = sphi 0, %s103
      %s118 = sphi 0, %s104
      %s122 = sphi 0, %s122
      %s124 = sphi 0, %s122
      %s125 = sphi 0, %s124
      %s139 = sphi 0, %s125
      %s143 = sphi 0, %s143
      %s145 = sphi 0, %s143
      %s146 = sphi 0, %s145
      %s160 = sphi 0, %s146
      %s164 = sphi 0, %s164
      %s166 = sphi 0, %s164
      %s167 = sphi 0, %s166
      %s181 = sphi 0, %s167
      %s185 = sphi 0, %s185
      %s187 = sphi 0, %s185
      %s188 = sphi 0, %s187
      %s202 = sphi 0, %s188
      %s206 = sphi 0, %s206
      %s208 = sphi 0, %s206
      %s209 = sphi 0, %s208
      %s223 = sphi 0, %s209
      %s229 = sphi 0, %s231
      %s232 = sphi 0, %s229
      %s233 = sphi 0, %s232
      %s249 = sphi 0, %s233
    $region4: #{tpu_custom_call.1} parent=1 // loop_header_branch
      %23 = sbr.rel (%p21) target = $region8
    $region5: #{tpu_custom_call.1} parent=1 // loop_body
      %s25 = ssub.s32 %s20, 1
      %s26 = ssub.s32 %s20, 2
      %s27 = sadd.s32 %s20, 1
      %s28 = ssub.s32 %s20, %s27
      %p29 = scmp.eq.s32.totalorder %s28, 0
      %s31 = sadd.s32 %s30, 1
      %s32 = scalar_select %p29, %s30, %s31
      %p35 = pneg %p29
      %p36 = scmp.eq.s32.totalorder %s20, 1
      %p37 = por %p35, %p36
      %p38 = scmp.ne.s32.totalorder %s30, %s33
      %p39 = scmp.eq.s32.totalorder %s20, 0
      %p40 = por %p38, %p39
      %p41 = scmp.ne.s32.totalorder %s30, %s33
      %p42 = scmp.eq.s32.totalorder %s25, 1
      %p43 = por %p41, %p42
      %p44 = scmp.ne.s32.totalorder %s33, %s34
      %p45 = scmp.eq.s32.totalorder %s25, 0
      %p46 = por %p44, %p45
      %p47 = scmp.ne.s32.totalorder %s33, %s34
      %p48 = scmp.eq.s32.totalorder %s26, 1
      %p49 = por %p47, %p48
      %p51 = scmp.ne.s32.totalorder %s34, %s50
      %p52 = scmp.eq.s32.totalorder %s26, 0
      %p53 = por %p51, %p52
      %s54 = ssub.s32 %s20, %s27
      %p55 = scmp.eq.s32.totalorder %s54, 0
      %s57 = sadd.s32 %s56, 1
      %s58 = scalar_select %p55, %s56, %s57
      %p61 = pneg %p55
      %p62 = scmp.eq.s32.totalorder %s20, 1
      %p63 = por %p61, %p62
      %p64 = scmp.ne.s32.totalorder %s56, %s59
      %p65 = scmp.eq.s32.totalorder %s20, 0
      %p66 = por %p64, %p65
      %p67 = scmp.ne.s32.totalorder %s56, %s59
      %p68 = scmp.eq.s32.totalorder %s25, 1
      %p69 = por %p67, %p68
      %p70 = scmp.ne.s32.totalorder %s59, %s60
      %p71 = scmp.eq.s32.totalorder %s25, 0
      %p72 = por %p70, %p71
      %p73 = scmp.ne.s32.totalorder %s59, %s60
      %p74 = scmp.eq.s32.totalorder %s26, 1
      %p75 = por %p73, %p74
      %p77 = scmp.ne.s32.totalorder %s60, %s76
      %p78 = scmp.eq.s32.totalorder %s26, 0
      %p79 = por %p77, %p78
      %s81 = sadd.s32 %s80, 1
      %p84 = scmp.eq.s32.totalorder %s20, 1
      %p85 = scmp.ne.s32.totalorder %s80, %s82
      %p86 = scmp.eq.s32.totalorder %s20, 0
      %p87 = por %p85, %p86
      %p88 = scmp.ne.s32.totalorder %s80, %s82
      %p89 = scmp.eq.s32.totalorder %s25, 1
      %p90 = por %p88, %p89
      %p91 = scmp.ne.s32.totalorder %s82, %s83
      %p92 = scmp.eq.s32.totalorder %s25, 0
      %p93 = por %p91, %p92
      %p94 = scmp.ne.s32.totalorder %s82, %s83
      %p95 = scmp.eq.s32.totalorder %s26, 1
      %p96 = por %p94, %p95
      %p98 = scmp.ne.s32.totalorder %s83, %s97
      %p99 = scmp.eq.s32.totalorder %s26, 0
      %p100 = por %p98, %p99
      %s102 = sadd.s32 %s101, 1
      %p105 = scmp.eq.s32.totalorder %s20, 1
      %p106 = scmp.ne.s32.totalorder %s101, %s103
      %p107 = scmp.eq.s32.totalorder %s20, 0
      %p108 = por %p106, %p107
      %p109 = scmp.ne.s32.totalorder %s101, %s103
      %p110 = scmp.eq.s32.totalorder %s25, 1
      %p111 = por %p109, %p110
      %p112 = scmp.ne.s32.totalorder %s103, %s104
      %p113 = scmp.eq.s32.totalorder %s25, 0
      %p114 = por %p112, %p113
      %p115 = scmp.ne.s32.totalorder %s103, %s104
      %p116 = scmp.eq.s32.totalorder %s26, 1
      %p117 = por %p115, %p116
      %p119 = scmp.ne.s32.totalorder %s104, %s118
      %p120 = scmp.eq.s32.totalorder %s26, 0
      %p121 = por %p119, %p120
      %s123 = sadd.s32 %s122, 1
      %p126 = scmp.eq.s32.totalorder %s20, 1
      %p127 = scmp.ne.s32.totalorder %s122, %s124
      %p128 = scmp.eq.s32.totalorder %s20, 0
      %p129 = por %p127, %p128
      %p130 = scmp.ne.s32.totalorder %s122, %s124
      %p131 = scmp.eq.s32.totalorder %s25, 1
      %p132 = por %p130, %p131
      %p133 = scmp.ne.s32.totalorder %s124, %s125
      %p134 = scmp.eq.s32.totalorder %s25, 0
      %p135 = por %p133, %p134
      %p136 = scmp.ne.s32.totalorder %s124, %s125
      %p137 = scmp.eq.s32.totalorder %s26, 1
      %p138 = por %p136, %p137
      %p140 = scmp.ne.s32.totalorder %s125, %s139
      %p141 = scmp.eq.s32.totalorder %s26, 0
      %p142 = por %p140, %p141
      %s144 = sadd.s32 %s143, 1
      %p147 = scmp.eq.s32.totalorder %s20, 1
      %p148 = scmp.ne.s32.totalorder %s143, %s145
      %p149 = scmp.eq.s32.totalorder %s20, 0
      %p150 = por %p148, %p149
      %p151 = scmp.ne.s32.totalorder %s143, %s145
      %p152 = scmp.eq.s32.totalorder %s25, 1
      %p153 = por %p151, %p152
      %p154 = scmp.ne.s32.totalorder %s145, %s146
      %p155 = scmp.eq.s32.totalorder %s25, 0
      %p156 = por %p154, %p155
      %p157 = scmp.ne.s32.totalorder %s145, %s146
      %p158 = scmp.eq.s32.totalorder %s26, 1
      %p159 = por %p157, %p158
      %p161 = scmp.ne.s32.totalorder %s146, %s160
      %p162 = scmp.eq.s32.totalorder %s26, 0
      %p163 = por %p161, %p162
      %s165 = sadd.s32 %s164, 1
      %p168 = scmp.eq.s32.totalorder %s20, 1
      %p169 = scmp.ne.s32.totalorder %s164, %s166
      %p170 = scmp.eq.s32.totalorder %s20, 0
      %p171 = por %p169, %p170
      %p172 = scmp.ne.s32.totalorder %s164, %s166
      %p173 = scmp.eq.s32.totalorder %s25, 1
      %p174 = por %p172, %p173
      %p175 = scmp.ne.s32.totalorder %s166, %s167
      %p176 = scmp.eq.s32.totalorder %s25, 0
      %p177 = por %p175, %p176
      %p178 = scmp.ne.s32.totalorder %s166, %s167
      %p179 = scmp.eq.s32.totalorder %s26, 1
      %p180 = por %p178, %p179
      %p182 = scmp.ne.s32.totalorder %s167, %s181
      %p183 = scmp.eq.s32.totalorder %s26, 0
      %p184 = por %p182, %p183
      %s186 = sadd.s32 %s185, 1
      %p189 = scmp.eq.s32.totalorder %s20, 1
      %p190 = scmp.ne.s32.totalorder %s185, %s187
      %p191 = scmp.eq.s32.totalorder %s20, 0
      %p192 = por %p190, %p191
      %p193 = scmp.ne.s32.totalorder %s185, %s187
      %p194 = scmp.eq.s32.totalorder %s25, 1
      %p195 = por %p193, %p194
      %p196 = scmp.ne.s32.totalorder %s187, %s188
      %p197 = scmp.eq.s32.totalorder %s25, 0
      %p198 = por %p196, %p197
      %p199 = scmp.ne.s32.totalorder %s187, %s188
      %p200 = scmp.eq.s32.totalorder %s26, 1
      %p201 = por %p199, %p200
      %p203 = scmp.ne.s32.totalorder %s188, %s202
      %p204 = scmp.eq.s32.totalorder %s26, 0
      %p205 = por %p203, %p204
      %s207 = sadd.s32 %s206, 1
      %p210 = scmp.eq.s32.totalorder %s20, 1
      %p211 = scmp.ne.s32.totalorder %s206, %s208
      %p212 = scmp.eq.s32.totalorder %s20, 0
      %p213 = por %p211, %p212
      %p214 = scmp.ne.s32.totalorder %s206, %s208
      %p215 = scmp.eq.s32.totalorder %s25, 1
      %p216 = por %p214, %p215
      %p217 = scmp.ne.s32.totalorder %s208, %s209
      %p218 = scmp.eq.s32.totalorder %s25, 0
      %p219 = por %p217, %p218
      %p220 = scmp.ne.s32.totalorder %s208, %s209
      %p221 = scmp.eq.s32.totalorder %s26, 1
      %p222 = por %p220, %p221
      %p224 = scmp.ne.s32.totalorder %s209, %s223
      %p225 = scmp.eq.s32.totalorder %s26, 0
      %p226 = por %p224, %p225
      %s227 = ssub.s32 %s20, %s27
      %p228 = scmp.eq.s32.totalorder %s227, 0
      %s230 = sadd.s32 %s229, 1
      %s231 = scalar_select %p228, %s229, %s230
      %p234 = pneg %p228
      %p235 = scmp.eq.s32.totalorder %s20, 1
      %p236 = por %p234, %p235
      %p237 = scmp.ne.s32.totalorder %s229, %s232
      %p238 = scmp.eq.s32.totalorder %s20, 0
      %p239 = por %p237, %p238
      %p240 = scmp.ne.s32.totalorder %s229, %s232
      %p241 = scmp.eq.s32.totalorder %s25, 1
      %p242 = por %p240, %p241
      %p243 = scmp.ne.s32.totalorder %s232, %s233
      %p244 = scmp.eq.s32.totalorder %s25, 0
      %p245 = por %p243, %p244
      %p246 = scmp.ne.s32.totalorder %s232, %s233
      %p247 = scmp.eq.s32.totalorder %s26, 1
      %p248 = por %p246, %p247
      %p250 = scmp.ne.s32.totalorder %s233, %s249
      %p251 = scmp.eq.s32.totalorder %s26, 0
      %p252 = por %p250, %p251
      %p253 = scmp.le.s32.totalorder 1, %s20
      %p254 = scmp.lt.s32.totalorder %s20, 3
      %p255 = pnand %p253, %p254
      %p256 = pneg %p255
      // Predicated region
      $region9: #{tpu_custom_call.1} parent=5 // pred_check
        _
      $region10: #{tpu_custom_call.1} parent=5 // pred_check_branch
        %258 = sbr.rel (%p255) target = $region12
      $region11: #{tpu_custom_call.1} parent=5 // pred_region
        %s259 = ssub.s32 %s20, 1
        // Predicated region
        $region13: #{tpu_custom_call.1} parent=11 // pred_check
          %p260 = pneg %p93
        $region14: #{tpu_custom_call.1} parent=11 // pred_check_branch
          %262 = sbr.rel (%p260) target = $region16
        $region15: #{tpu_custom_call.1} parent=11 // pred_region
          _
        $region16: #{tpu_custom_call.1} parent=11 // pred_fallthru
          _
        // Predicated region
        $region17: #{tpu_custom_call.1} parent=11 // pred_check
          %p263 = pneg %p114
        $region18: #{tpu_custom_call.1} parent=11 // pred_check_branch
          %265 = sbr.rel (%p263) target = $region20
        $region19: #{tpu_custom_call.1} parent=11 // pred_region
          _
        $region20: #{tpu_custom_call.1} parent=11 // pred_fallthru
          _
        // Predicated region
        $region21: #{tpu_custom_call.1} parent=11 // pred_check
          %p266 = pneg %p135
        $region22: #{tpu_custom_call.1} parent=11 // pred_check_branch
          %268 = sbr.rel (%p266) target = $region24
        $region23: #{tpu_custom_call.1} parent=11 // pred_region
          _
        $region24: #{tpu_custom_call.1} parent=11 // pred_fallthru
          _
        // Predicated region
        $region25: #{tpu_custom_call.1} parent=11 // pred_check
          %p269 = pneg %p156
        $region26: #{tpu_custom_call.1} parent=11 // pred_check_branch
          %271 = sbr.rel (%p269) target = $region28
        $region27: #{tpu_custom_call.1} parent=11 // pred_region
          _
        $region28: #{tpu_custom_call.1} parent=11 // pred_fallthru
          _
        // Predicated region
        $region29: #{tpu_custom_call.1} parent=11 // pred_check
          %p272 = pneg %p177
        $region30: #{tpu_custom_call.1} parent=11 // pred_check_branch
          %274 = sbr.rel (%p272) target = $region32
        $region31: #{tpu_custom_call.1} parent=11 // pred_region
          _
        $region32: #{tpu_custom_call.1} parent=11 // pred_fallthru
          _
        // Predicated region
        $region33: #{tpu_custom_call.1} parent=11 // pred_check
          %p275 = pneg %p198
        $region34: #{tpu_custom_call.1} parent=11 // pred_check_branch
          %277 = sbr.rel (%p275) target = $region36
        $region35: #{tpu_custom_call.1} parent=11 // pred_region
          _
        $region36: #{tpu_custom_call.1} parent=11 // pred_fallthru
          _
        // Predicated region
        $region37: #{tpu_custom_call.1} parent=11 // pred_check
          %p278 = pneg %p219
        $region38: #{tpu_custom_call.1} parent=11 // pred_check_branch
          %280 = sbr.rel (%p278) target = $region40
        $region39: #{tpu_custom_call.1} parent=11 // pred_region
          _
        $region40: #{tpu_custom_call.1} parent=11 // pred_fallthru
          _
      $region12: #{tpu_custom_call.1} parent=5 // pred_fallthru
        _
      %p281 = scmp.lt.s32.totalorder %s20, 2
      // Predicated region
      $region41: #{tpu_custom_call.1} parent=5 // pred_check
        %p282 = pneg %p281
      $region42: #{tpu_custom_call.1} parent=5 // pred_check_branch
        %284 = sbr.rel (%p282) target = $region44
      $region43: #{tpu_custom_call.1} parent=5 // pred_region
        // Predicated region
        $region45: #{tpu_custom_call.1} parent=43 // pred_check
          %p285 = pneg %p40
        $region46: #{tpu_custom_call.1} parent=43 // pred_check_branch
          %287 = sbr.rel (%p285) target = $region48
        $region47: #{tpu_custom_call.1} parent=43 // pred_region
          %s288 = smul.u32 32, %s20
          %p289 = scmp.lt.s32.totalorder %s288, 63
          %s290 = scalar_select %p289, %s288, 63
          %s291 = smul.addr %s290, 8
          %s292 = scalar_lea.vmem %s0, %s291
          %s293 = smul.u32 32, %s20
        $region48: #{tpu_custom_call.1} parent=43 // pred_fallthru
          _
        // Predicated region
        $region49: #{tpu_custom_call.1} parent=43 // pred_check
          %p294 = pneg %p66
        $region50: #{tpu_custom_call.1} parent=43 // pred_check_branch
          %296 = sbr.rel (%p294) target = $region52
        $region51: #{tpu_custom_call.1} parent=43 // pred_region
          %s297 = smul.u32 32, %s20
          %p298 = scmp.lt.s32.totalorder %s297, 63
          %s299 = scalar_select %p298, %s297, 63
          %s300 = smul.addr %s299, 8
          %s301 = scalar_lea.vmem %s1, %s300
          %s302 = smul.u32 32, %s20
        $region52: #{tpu_custom_call.1} parent=43 // pred_fallthru
          _
      $region44: #{tpu_custom_call.1} parent=5 // pred_fallthru
        _
      %p303 = scmp.le.s32.totalorder 1, %s20
      %p304 = scmp.lt.s32.totalorder %s20, 3
      %p305 = pnand %p303, %p304
      %p306 = pneg %p305
      // Predicated region
      $region53: #{tpu_custom_call.1} parent=5 // pred_check
        _
      $region54: #{tpu_custom_call.1} parent=5 // pred_check_branch
        %308 = sbr.rel (%p305) target = $region56
      $region55: #{tpu_custom_call.1} parent=5 // pred_region
        %s309 = ssub.s32 %s20, 1
        %s310 = smul.u32 32, %s25
        %p311 = scmp.lt.s32.totalorder %s310, 63
        %s312 = scalar_select %p311, %s310, 63
        %s313 = smul.addr %s312, 8
        %s314 = scalar_lea.vmem %s0, %s313
        %p315 = pneg %p46
        %p316 = pneg %p43
        %s317 = smul.u32 32, %s25
        %p318 = scmp.lt.s32.totalorder %s317, 63
        %s319 = scalar_select %p318, %s317, 63
        %s320 = smul.addr %s319, 8
        %s321 = scalar_lea.vmem %s1, %s320
        %p322 = pneg %p72
        %p323 = pneg %p69
        %p324 = pneg %p93
        %p325 = pneg %p90
        %p326 = pneg %p114
        %p327 = pneg %p111
        %p328 = pneg %p135
        %p329 = pneg %p132
        %p330 = pneg %p156
        %p331 = pneg %p153
        %p332 = pneg %p177
        %p333 = pneg %p174
        %p334 = pneg %p198
        %p335 = pneg %p195
        %p336 = pneg %p219
        %p337 = pneg %p216
        %p338 = pneg %p245
        %p339 = pneg %p242
        %s340 = sand.u32 %s232, 1
        %s341 = scalar_lea.sflag [#allocation4], %s340
        %s342 = sand.u32 %s232, 1
        %s343 = smul.addr %s342, 2
        %s344 = scalar_lea.vmem [#allocation3], %s343
        %s345 = smul.u32 32, %s25
        %p346 = scmp.lt.s32.totalorder %s345, 63
        %s347 = scalar_select %p346, %s345, 63
        %s348 = smul.addr %s347, 8
        %s349 = scalar_lea.vmem %s0, %s348
        %s350 = smul.u32 32, %s25
        %s351 = smul.u32 32, %s25
        %p352 = scmp.lt.s32.totalorder %s351, 63
        %s353 = scalar_select %p352, %s351, 63
        %s354 = smul.addr %s353, 8
        %s355 = scalar_lea.vmem %s1, %s354
        %s356 = smul.u32 32, %s25
        %v358 = vld [vmem:[%s349] sm:$0xff]
        %v359 = vld [vmem:[%s349 + $0x8] sm:$0xff]
        %v360 = vld [vmem:[%s349 + $0x10] sm:$0xff]
        %v361 = vld [vmem:[%s349 + $0x18] sm:$0xff]
        %v362 = vld [vmem:[%s349 + $0x20] sm:$0xff]
        %v363 = vld [vmem:[%s349 + $0x28] sm:$0xff]
        %v364 = vld [vmem:[%s349 + $0x30] sm:$0xff]
        %v365 = vld [vmem:[%s349 + $0x38] sm:$0xff]
        %v366 = vld [vmem:[%s349 + $0x40] sm:$0xff]
        %v367 = vld [vmem:[%s349 + $0x48] sm:$0xff]
        %v368 = vld [vmem:[%s349 + $0x50] sm:$0xff]
        %v369 = vld [vmem:[%s349 + $0x58] sm:$0xff]
        %v370 = vld [vmem:[%s349 + $0x60] sm:$0xff]
        %v371 = vld [vmem:[%s349 + $0x68] sm:$0xff]
        %v372 = vld [vmem:[%s349 + $0x70] sm:$0xff]
        %v373 = vld [vmem:[%s349 + $0x78] sm:$0xff]
        %v374 = vld [vmem:[%s349 + $0x80] sm:$0xff]
        %v375 = vld [vmem:[%s349 + $0x88] sm:$0xff]
        %v376 = vld [vmem:[%s349 + $0x90] sm:$0xff]
        %v377 = vld [vmem:[%s349 + $0x98] sm:$0xff]
        %v378 = vld [vmem:[%s349 + $0xa0] sm:$0xff]
        %v379 = vld [vmem:[%s349 + $0xa8] sm:$0xff]
        %v380 = vld [vmem:[%s349 + $0xb0] sm:$0xff]
        %v381 = vld [vmem:[%s349 + $0xb8] sm:$0xff]
        %v382 = vld [vmem:[%s349 + $0xc0] sm:$0xff]
        %v383 = vld [vmem:[%s349 + $0xc8] sm:$0xff]
        %v384 = vld [vmem:[%s349 + $0xd0] sm:$0xff]
        %v385 = vld [vmem:[%s349 + $0xd8] sm:$0xff]
        %v386 = vld [vmem:[%s349 + $0xe0] sm:$0xff]
        %v387 = vld [vmem:[%s349 + $0xe8] sm:$0xff]
        %v388 = vld [vmem:[%s349 + $0xf0] sm:$0xff]
        %v389 = vld [vmem:[%s349 + $0xf8] sm:$0xff]
        %v390 = vpack.c.bf16 %v359, %v358
        %v391 = vpack.c.bf16 %v361, %v360
        %v392 = vpack.c.bf16 %v363, %v362
        %v393 = vpack.c.bf16 %v365, %v364
        %v394 = vpack.c.bf16 %v367, %v366
        %v395 = vpack.c.bf16 %v369, %v368
        %v396 = vpack.c.bf16 %v371, %v370
        %v397 = vpack.c.bf16 %v373, %v372
        %v398 = vpack.c.bf16 %v375, %v374
        %v399 = vpack.c.bf16 %v377, %v376
        %v400 = vpack.c.bf16 %v379, %v378
        %v401 = vpack.c.bf16 %v381, %v380
        %v402 = vpack.c.bf16 %v383, %v382
        %v403 = vpack.c.bf16 %v385, %v384
        %v404 = vpack.c.bf16 %v387, %v386
        %v405 = vpack.c.bf16 %v389, %v388
        %v406 = vld [vmem:[%s355] sm:$0xff]
        %v407 = vld [vmem:[%s355 + $0x8] sm:$0xff]
        %v408 = vld [vmem:[%s355 + $0x10] sm:$0xff]
        %v409 = vld [vmem:[%s355 + $0x18] sm:$0xff]
        %v410 = vld [vmem:[%s355 + $0x20] sm:$0xff]
        %v411 = vld [vmem:[%s355 + $0x28] sm:$0xff]
        %v412 = vld [vmem:[%s355 + $0x30] sm:$0xff]
        %v413 = vld [vmem:[%s355 + $0x38] sm:$0xff]
        %v414 = vld [vmem:[%s355 + $0x40] sm:$0xff]
        %v415 = vld [vmem:[%s355 + $0x48] sm:$0xff]
        %v416 = vld [vmem:[%s355 + $0x50] sm:$0xff]
        %v417 = vld [vmem:[%s355 + $0x58] sm:$0xff]
        %v418 = vld [vmem:[%s355 + $0x60] sm:$0xff]
        %v419 = vld [vmem:[%s355 + $0x68] sm:$0xff]
        %v420 = vld [vmem:[%s355 + $0x70] sm:$0xff]
        %v421 = vld [vmem:[%s355 + $0x78] sm:$0xff]
        %v422 = vld [vmem:[%s355 + $0x80] sm:$0xff]
        %v423 = vld [vmem:[%s355 + $0x88] sm:$0xff]
        %v424 = vld [vmem:[%s355 + $0x90] sm:$0xff]
        %v425 = vld [vmem:[%s355 + $0x98] sm:$0xff]
        %v426 = vld [vmem:[%s355 + $0xa0] sm:$0xff]
        %v427 = vld [vmem:[%s355 + $0xa8] sm:$0xff]
        %v428 = vld [vmem:[%s355 + $0xb0] sm:$0xff]
        %v429 = vld [vmem:[%s355 + $0xb8] sm:$0xff]
        %v430 = vld [vmem:[%s355 + $0xc0] sm:$0xff]
        %v431 = vld [vmem:[%s355 + $0xc8] sm:$0xff]
        %v432 = vld [vmem:[%s355 + $0xd0] sm:$0xff]
        %v433 = vld [vmem:[%s355 + $0xd8] sm:$0xff]
        %v434 = vld [vmem:[%s355 + $0xe0] sm:$0xff]
        %v435 = vld [vmem:[%s355 + $0xe8] sm:$0xff]
        %v436 = vld [vmem:[%s355 + $0xf0] sm:$0xff]
        %v437 = vld [vmem:[%s355 + $0xf8] sm:$0xff]
        %v438 = vpack.c.bf16 %v407, %v406
        %v439 = vpack.c.bf16 %v409, %v408
        %v440 = vpack.c.bf16 %v411, %v410
        %v441 = vpack.c.bf16 %v413, %v412
        %v442 = vpack.c.bf16 %v415, %v414
        %v443 = vpack.c.bf16 %v417, %v416
        %v444 = vpack.c.bf16 %v419, %v418
        %v445 = vpack.c.bf16 %v421, %v420
        %v446 = vpack.c.bf16 %v423, %v422
        %v447 = vpack.c.bf16 %v425, %v424
        %v448 = vpack.c.bf16 %v427, %v426
        %v449 = vpack.c.bf16 %v429, %v428
        %v450 = vpack.c.bf16 %v431, %v430
        %v451 = vpack.c.bf16 %v433, %v432
        %v452 = vpack.c.bf16 %v435, %v434
        %v453 = vpack.c.bf16 %v437, %v436
        %v454 = vld [vmem:[%s2] sm:$0xf]
        %v455 = vld [vmem:[%s2 + $0x4] sm:$0xf]
        %v456 = vld [vmem:[%s2 + $0x8] sm:$0xf]
        %v457 = vld [vmem:[%s2 + $0xc] sm:$0xf]
        %v458 = vld [vmem:[%s3] sm:$0xf]
        %v459 = vld [vmem:[%s3 + $0x4] sm:$0xf]
        %v460 = vld [vmem:[%s3 + $0x8] sm:$0xf]
        %v461 = vld [vmem:[%s3 + $0xc] sm:$0xf]
        %v462 = vld [vmem:[%s4] sm:$0x1]
        %v467 = vunpack.c.l.b16 %v458
        %v468 = vunpack.c.l.b16 %v459
        %v469 = vunpack.c.l.b16 %v460
        %v470 = vunpack.c.l.b16 %v461
        %v471 = vpack.c.b16 %v468, %v467
        %v472 = vpack.c.b16 %v470, %v469
        %vm475 = vcmask 261120
        %v477 = vsel %vm475, %v438, 0
        %v480 = vsel %vm475, %v439, 0
        %v483 = vsel %vm475, %v440, 0
        %v486 = vsel %vm475, %v441, 0
        %v489 = vsel %vm475, %v442, 0
        %v492 = vsel %vm475, %v443, 0
        %v495 = vsel %vm475, %v444, 0
        %v498 = vsel %vm475, %v445, 0
        %v501 = vsel %vm475, %v446, 0
        %v504 = vsel %vm475, %v447, 0
        %v507 = vsel %vm475, %v448, 0
        %v510 = vsel %vm475, %v449, 0
        %v513 = vsel %vm475, %v450, 0
        %v516 = vsel %vm475, %v451, 0
        %v519 = vsel %vm475, %v452, 0
        %v522 = vsel %vm475, %v453, 0
        %524 = vmatprep.subr.bf16.mxu0 0
        %525 = vmatpush1.bf16.msra.mxu0 %v471
        %526 = vmatprep.subr.bf16.mxu0 0
        %527 = vmatpush1.bf16.msra.mxu0 %v472
        %528 = vmatprep.subr.bf16.mxu0 0
        %529 = vmatpush1.bf16.msra.mxu0 0
        %530 = vmatprep.subr.bf16.mxu0 0
        %531 = vmatpush1.bf16.msra.mxu0 0
        %532 = vmatprep.subr.bf16.mxu0 0
        %533 = vmatpush1.bf16.msra.mxu0 0
        %534 = vmatprep.subr.bf16.mxu0 0
        %535 = vmatpush1.bf16.msra.mxu0 0
        %536 = vmatprep.subr.bf16.mxu0 0
        %537 = vmatpush1.bf16.msra.mxu0 0
        %538 = vmatprep.subr.bf16.mxu0 0
        %539 = vmatpush1.bf16.msra.mxu0 0
        %540 = vmatprep.subr.bf16.mxu0 0
        %541 = vmatpush1.bf16.msra.mxu0 0
        %542 = vmatprep.subr.bf16.mxu0 0
        %543 = vmatpush1.bf16.msra.mxu0 0
        %544 = vmatprep.subr.bf16.mxu0 0
        %545 = vmatpush1.bf16.msra.mxu0 0
        %546 = vmatprep.subr.bf16.mxu0 0
        %547 = vmatpush1.bf16.msra.mxu0 0
        %548 = vmatprep.subr.bf16.mxu0 0
        %549 = vmatpush1.bf16.msra.mxu0 0
        %550 = vmatprep.subr.bf16.mxu0 0
        %551 = vmatpush1.bf16.msra.mxu0 0
        %552 = vmatprep.subr.bf16.mxu0 0
        %553 = vmatpush1.bf16.msra.mxu0 0
        %554 = vmatprep.subr.bf16.mxu0 0
        %555 = vmatpush1.bf16.msra.mxu0 0
        %556 = vmatprep.mubr.bf16.mxu0 0
        %557 = vmatmul.mubr.bf16.gmra.mrb[0].mxu0 %v477
        %v558 = vpop.f32.mrb[0].mxu0
        %v559 = vadd.f32 0.0, %v558
        %v560 = vpop.f32.mrb[0].mxu0
        %v561 = vpop.f32.mrb[0].mxu0
        %v562 = vadd.f32 0.0, %v561
        %v563 = vpop.f32.mrb[0].mxu0
        %564 = vmatprep.mubr.bf16.mxu0 0
        %565 = vmatmul.mubr.bf16.gmra.mrb[0].mxu0 %v480
        %v566 = vpop.f32.mrb[0].mxu0
        %v567 = vadd.f32 0.0, %v566
        %v568 = vpop.f32.mrb[0].mxu0
        %v569 = vpop.f32.mrb[0].mxu0
        %v570 = vadd.f32 0.0, %v569
        %v571 = vpop.f32.mrb[0].mxu0
        %572 = vmatprep.mubr.bf16.mxu0 0
        %573 = vmatmul.mubr.bf16.gmra.mrb[0].mxu0 %v483
        %v574 = vpop.f32.mrb[0].mxu0
        %v575 = vadd.f32 0.0, %v574
        %v576 = vpop.f32.mrb[0].mxu0
        %v577 = vpop.f32.mrb[0].mxu0
        %v578 = vadd.f32 0.0, %v577
        %v579 = vpop.f32.mrb[0].mxu0
        %580 = vmatprep.mubr.bf16.mxu0 0
        %581 = vmatmul.mubr.bf16.gmra.mrb[0].mxu0 %v486
        %v582 = vpop.f32.mrb[0].mxu0
        %v583 = vadd.f32 0.0, %v582
        %v584 = vpop.f32.mrb[0].mxu0
        %v585 = vpop.f32.mrb[0].mxu0
        %v586 = vadd.f32 0.0, %v585
        %v587 = vpop.f32.mrb[0].mxu0
        %588 = vmatprep.mubr.bf16.mxu0 0
        %589 = vmatmul.mubr.bf16.gmra.mrb[0].mxu0 %v489
        %v590 = vpop.f32.mrb[0].mxu0
        %v591 = vadd.f32 0.0, %v590
        %v592 = vpop.f32.mrb[0].mxu0
        %v593 = vpop.f32.mrb[0].mxu0
        %v594 = vadd.f32 0.0, %v593
        %v595 = vpop.f32.mrb[0].mxu0
        %596 = vmatprep.mubr.bf16.mxu0 0
        %597 = vmatmul.mubr.bf16.gmra.mrb[0].mxu0 %v492
        %v598 = vpop.f32.mrb[0].mxu0
        %v599 = vadd.f32 0.0, %v598
        %v600 = vpop.f32.mrb[0].mxu0
        %v601 = vpop.f32.mrb[0].mxu0
        %v602 = vadd.f32 0.0, %v601
        %v603 = vpop.f32.mrb[0].mxu0
        %604 = vmatprep.mubr.bf16.mxu0 0
        %605 = vmatmul.mubr.bf16.gmra.mrb[0].mxu0 %v495
        %v606 = vpop.f32.mrb[0].mxu0
        %v607 = vadd.f32 0.0, %v606
        %v608 = vpop.f32.mrb[0].mxu0
        %v609 = vpop.f32.mrb[0].mxu0
        %v610 = vadd.f32 0.0, %v609
        %v611 = vpop.f32.mrb[0].mxu0
        %612 = vmatprep.mubr.bf16.mxu0 0
        %613 = vmatmul.mubr.bf16.gmra.mrb[0].mxu0 %v498
        %v614 = vpop.f32.mrb[0].mxu0
        %v615 = vadd.f32 0.0, %v614
        %v616 = vpop.f32.mrb[0].mxu0
        %v617 = vpop.f32.mrb[0].mxu0
        %v618 = vadd.f32 0.0, %v617
        %v619 = vpop.f32.mrb[0].mxu0
        %620 = vmatprep.mubr.bf16.mxu0 0
        %621 = vmatmul.mubr.bf16.gmra.mrb[0].mxu0 %v501
        %v622 = vpop.f32.mrb[0].mxu0
        %v623 = vadd.f32 0.0, %v622
        %v624 = vpop.f32.mrb[0].mxu0
        %v625 = vpop.f32.mrb[0].mxu0
        %v626 = vadd.f32 0.0, %v625
        %v627 = vpop.f32.mrb[0].mxu0
        %628 = vmatprep.mubr.bf16.mxu0 0
        %629 = vmatmul.mubr.bf16.gmra.mrb[0].mxu0 %v504
        %v630 = vpop.f32.mrb[0].mxu0
        %v631 = vadd.f32 0.0, %v630
        %v632 = vpop.f32.mrb[0].mxu0
        %v633 = vpop.f32.mrb[0].mxu0
        %v634 = vadd.f32 0.0, %v633
        %v635 = vpop.f32.mrb[0].mxu0
        %636 = vmatprep.mubr.bf16.mxu0 0
        %637 = vmatmul.mubr.bf16.gmra.mrb[0].mxu0 %v507
        %v638 = vpop.f32.mrb[0].mxu0
        %v639 = vadd.f32 0.0, %v638
        %v640 = vpop.f32.mrb[0].mxu0
        %v641 = vpop.f32.mrb[0].mxu0
        %v642 = vadd.f32 0.0, %v641
        %v643 = vpop.f32.mrb[0].mxu0
        %644 = vmatprep.mubr.bf16.mxu0 0
        %645 = vmatmul.mubr.bf16.gmra.mrb[0].mxu0 %v510
        %v646 = vpop.f32.mrb[0].mxu0
        %v647 = vadd.f32 0.0, %v646
        %v648 = vpop.f32.mrb[0].mxu0
        %v649 = vpop.f32.mrb[0].mxu0
        %v650 = vadd.f32 0.0, %v649
        %v651 = vpop.f32.mrb[0].mxu0
        %652 = vmatprep.mubr.bf16.mxu0 0
        %653 = vmatmul.mubr.bf16.gmra.mrb[0].mxu0 %v513
        %v654 = vpop.f32.mrb[0].mxu0
        %v655 = vadd.f32 0.0, %v654
        %v656 = vpop.f32.mrb[0].mxu0
        %v657 = vpop.f32.mrb[0].mxu0
        %v658 = vadd.f32 0.0, %v657
        %v659 = vpop.f32.mrb[0].mxu0
        %660 = vmatprep.mubr.bf16.mxu0 0
        %661 = vmatmul.mubr.bf16.gmra.mrb[0].mxu0 %v516
        %v662 = vpop.f32.mrb[0].mxu0
        %v663 = vadd.f32 0.0, %v662
        %v664 = vpop.f32.mrb[0].mxu0
        %v665 = vpop.f32.mrb[0].mxu0
        %v666 = vadd.f32 0.0, %v665
        %v667 = vpop.f32.mrb[0].mxu0
        %668 = vmatprep.mubr.bf16.mxu0 0
        %669 = vmatmul.mubr.bf16.gmra.mrb[0].mxu0 %v519
        %v670 = vpop.f32.mrb[0].mxu0
        %v671 = vadd.f32 0.0, %v670
        %v672 = vpop.f32.mrb[0].mxu0
        %v673 = vpop.f32.mrb[0].mxu0
        %v674 = vadd.f32 0.0, %v673
        %v675 = vpop.f32.mrb[0].mxu0
        %676 = vmatprep.mubr.bf16.mxu0 0
        %677 = vmatmul.mubr.bf16.gmra.mrb[0].mxu0 %v522
        %v678 = vpop.f32.mrb[0].mxu0
        %v679 = vadd.f32 0.0, %v678
        %v680 = vpop.f32.mrb[0].mxu0
        %v681 = vpop.f32.mrb[0].mxu0
        %v682 = vadd.f32 0.0, %v681
        %v683 = vpop.f32.mrb[0].mxu0
        %684 = vdwg.mxu0
        %v689 = vunpack.c.l.b16 %v454
        %v690 = vunpack.c.l.b16 %v455
        %v691 = vunpack.c.l.b16 %v456
        %v692 = vunpack.c.l.b16 %v457
        %v693 = vpack.c.b16 %v690, %v689
        %v694 = vpack.c.b16 %v692, %v691
        %v698 = vsel %vm475, %v390, 0
        %v701 = vsel %vm475, %v391, 0
        %v704 = vsel %vm475, %v392, 0
        %v707 = vsel %vm475, %v393, 0
        %v710 = vsel %vm475, %v394, 0
        %v713 = vsel %vm475, %v395, 0
        %v716 = vsel %vm475, %v396, 0
        %v719 = vsel %vm475, %v397, 0
        %v722 = vsel %vm475, %v398, 0
        %v725 = vsel %vm475, %v399, 0
        %v728 = vsel %vm475, %v400, 0
        %v731 = vsel %vm475, %v401, 0
        %v734 = vsel %vm475, %v402, 0
        %v737 = vsel %vm475, %v403, 0
        %v740 = vsel %vm475, %v404, 0
        %v743 = vsel %vm475, %v405, 0
        %745 = vmatprep.subr.bf16.mxu0 0
        %746 = vmatpush1.bf16.msra.mxu0 %v693
        %747 = vmatprep.subr.bf16.mxu0 0
        %748 = vmatpush1.bf16.msra.mxu0 %v694
        %749 = vmatprep.subr.bf16.mxu0 0
        %750 = vmatpush1.bf16.msra.mxu0 0
        %751 = vmatprep.subr.bf16.mxu0 0
        %752 = vmatpush1.bf16.msra.mxu0 0
        %753 = vmatprep.subr.bf16.mxu0 0
        %754 = vmatpush1.bf16.msra.mxu0 0
        %755 = vmatprep.subr.bf16.mxu0 0
        %756 = vmatpush1.bf16.msra.mxu0 0
        %757 = vmatprep.subr.bf16.mxu0 0
        %758 = vmatpush1.bf16.msra.mxu0 0
        %759 = vmatprep.subr.bf16.mxu0 0
        %760 = vmatpush1.bf16.msra.mxu0 0
        %761 = vmatprep.subr.bf16.mxu0 0
        %762 = vmatpush1.bf16.msra.mxu0 0
        %763 = vmatprep.subr.bf16.mxu0 0
        %764 = vmatpush1.bf16.msra.mxu0 0
        %765 = vmatprep.subr.bf16.mxu0 0
        %766 = vmatpush1.bf16.msra.mxu0 0
        %767 = vmatprep.subr.bf16.mxu0 0
        %768 = vmatpush1.bf16.msra.mxu0 0
        %769 = vmatprep.subr.bf16.mxu0 0
        %770 = vmatpush1.bf16.msra.mxu0 0
        %771 = vmatprep.subr.bf16.mxu0 0
        %772 = vmatpush1.bf16.msra.mxu0 0
        %773 = vmatprep.subr.bf16.mxu0 0
        %774 = vmatpush1.bf16.msra.mxu0 0
        %775 = vmatprep.subr.bf16.mxu0 0
        %776 = vmatpush1.bf16.msra.mxu0 0
        %777 = vmatprep.mubr.bf16.mxu0 0
        %778 = vmatmul.mubr.bf16.gmra.mrb[0].mxu0 %v698
        %v779 = vpop.f32.mrb[0].mxu0
        %v780 = vadd.f32 %v559, %v779
        %v781 = vpop.f32.mrb[0].mxu0
        %v782 = vpop.f32.mrb[0].mxu0
        %v783 = vadd.f32 %v562, %v782
        %v784 = vpop.f32.mrb[0].mxu0
        %785 = vmatprep.mubr.bf16.mxu0 0
        %786 = vmatmul.mubr.bf16.gmra.mrb[0].mxu0 %v701
        %v787 = vpop.f32.mrb[0].mxu0
        %v788 = vadd.f32 %v567, %v787
        %v789 = vpop.f32.mrb[0].mxu0
        %v790 = vpop.f32.mrb[0].mxu0
        %v791 = vadd.f32 %v570, %v790
        %v792 = vpop.f32.mrb[0].mxu0
        %793 = vmatprep.mubr.bf16.mxu0 0
        %794 = vmatmul.mubr.bf16.gmra.mrb[0].mxu0 %v704
        %v795 = vpop.f32.mrb[0].mxu0
        %v796 = vadd.f32 %v575, %v795
        %v797 = vpop.f32.mrb[0].mxu0
        %v798 = vpop.f32.mrb[0].mxu0
        %v799 = vadd.f32 %v578, %v798
        %v800 = vpop.f32.mrb[0].mxu0
        %801 = vmatprep.mubr.bf16.mxu0 0
        %802 = vmatmul.mubr.bf16.gmra.mrb[0].mxu0 %v707
        %v803 = vpop.f32.mrb[0].mxu0
        %v804 = vadd.f32 %v583, %v803
        %v805 = vpop.f32.mrb[0].mxu0
        %v806 = vpop.f32.mrb[0].mxu0
        %v807 = vadd.f32 %v586, %v806
        %v808 = vpop.f32.mrb[0].mxu0
        %809 = vmatprep.mubr.bf16.mxu0 0
        %810 = vmatmul.mubr.bf16.gmra.mrb[0].mxu0 %v710
        %v811 = vpop.f32.mrb[0].mxu0
        %v812 = vadd.f32 %v591, %v811
        %v813 = vpop.f32.mrb[0].mxu0
        %v814 = vpop.f32.mrb[0].mxu0
        %v815 = vadd.f32 %v594, %v814
        %v816 = vpop.f32.mrb[0].mxu0
        %817 = vmatprep.mubr.bf16.mxu0 0
        %818 = vmatmul.mubr.bf16.gmra.mrb[0].mxu0 %v713
        %v819 = vpop.f32.mrb[0].mxu0
        %v820 = vadd.f32 %v599, %v819
        %v821 = vpop.f32.mrb[0].mxu0
        %v822 = vpop.f32.mrb[0].mxu0
        %v823 = vadd.f32 %v602, %v822
        %v824 = vpop.f32.mrb[0].mxu0
        %825 = vmatprep.mubr.bf16.mxu0 0
        %826 = vmatmul.mubr.bf16.gmra.mrb[0].mxu0 %v716
        %v827 = vpop.f32.mrb[0].mxu0
        %v828 = vadd.f32 %v607, %v827
        %v829 = vpop.f32.mrb[0].mxu0
        %v830 = vpop.f32.mrb[0].mxu0
        %v831 = vadd.f32 %v610, %v830
        %v832 = vpop.f32.mrb[0].mxu0
        %833 = vmatprep.mubr.bf16.mxu0 0
        %834 = vmatmul.mubr.bf16.gmra.mrb[0].mxu0 %v719
        %v835 = vpop.f32.mrb[0].mxu0
        %v836 = vadd.f32 %v615, %v835
        %v837 = vpop.f32.mrb[0].mxu0
        %v838 = vpop.f32.mrb[0].mxu0
        %v839 = vadd.f32 %v618, %v838
        %v840 = vpop.f32.mrb[0].mxu0
        %841 = vmatprep.mubr.bf16.mxu0 0
        %842 = vmatmul.mubr.bf16.gmra.mrb[0].mxu0 %v722
        %v843 = vpop.f32.mrb[0].mxu0
        %v844 = vadd.f32 %v623, %v843
        %v845 = vpop.f32.mrb[0].mxu0
        %v846 = vpop.f32.mrb[0].mxu0
        %v847 = vadd.f32 %v626, %v846
        %v848 = vpop.f32.mrb[0].mxu0
        %849 = vmatprep.mubr.bf16.mxu0 0
        %850 = vmatmul.mubr.bf16.gmra.mrb[0].mxu0 %v725
        %v851 = vpop.f32.mrb[0].mxu0
        %v852 = vadd.f32 %v631, %v851
        %v853 = vpop.f32.mrb[0].mxu0
        %v854 = vpop.f32.mrb[0].mxu0
        %v855 = vadd.f32 %v634, %v854
        %v856 = vpop.f32.mrb[0].mxu0
        %857 = vmatprep.mubr.bf16.mxu0 0
        %858 = vmatmul.mubr.bf16.gmra.mrb[0].mxu0 %v728
        %v859 = vpop.f32.mrb[0].mxu0
        %v860 = vadd.f32 %v639, %v859
        %v861 = vpop.f32.mrb[0].mxu0
        %v862 = vpop.f32.mrb[0].mxu0
        %v863 = vadd.f32 %v642, %v862
        %v864 = vpop.f32.mrb[0].mxu0
        %865 = vmatprep.mubr.bf16.mxu0 0
        %866 = vmatmul.mubr.bf16.gmra.mrb[0].mxu0 %v731
        %v867 = vpop.f32.mrb[0].mxu0
        %v868 = vadd.f32 %v647, %v867
        %v869 = vpop.f32.mrb[0].mxu0
        %v870 = vpop.f32.mrb[0].mxu0
        %v871 = vadd.f32 %v650, %v870
        %v872 = vpop.f32.mrb[0].mxu0
        %873 = vmatprep.mubr.bf16.mxu0 0
        %874 = vmatmul.mubr.bf16.gmra.mrb[0].mxu0 %v734
        %v875 = vpop.f32.mrb[0].mxu0
        %v876 = vadd.f32 %v655, %v875
        %v877 = vpop.f32.mrb[0].mxu0
        %v878 = vpop.f32.mrb[0].mxu0
        %v879 = vadd.f32 %v658, %v878
        %v880 = vpop.f32.mrb[0].mxu0
        %881 = vmatprep.mubr.bf16.mxu0 0
        %882 = vmatmul.mubr.bf16.gmra.mrb[0].mxu0 %v737
        %v883 = vpop.f32.mrb[0].mxu0
        %v884 = vadd.f32 %v663, %v883
        %v885 = vpop.f32.mrb[0].mxu0
        %v886 = vpop.f32.mrb[0].mxu0
        %v887 = vadd.f32 %v666, %v886
        %v888 = vpop.f32.mrb[0].mxu0
        %889 = vmatprep.mubr.bf16.mxu0 0
        %890 = vmatmul.mubr.bf16.gmra.mrb[0].mxu0 %v740
        %v891 = vpop.f32.mrb[0].mxu0
        %v892 = vadd.f32 %v671, %v891
        %v893 = vpop.f32.mrb[0].mxu0
        %v894 = vpop.f32.mrb[0].mxu0
        %v895 = vadd.f32 %v674, %v894
        %v896 = vpop.f32.mrb[0].mxu0
        %897 = vmatprep.mubr.bf16.mxu0 0
        %898 = vmatmul.mubr.bf16.gmra.mrb[0].mxu0 %v743
        %v899 = vpop.f32.mrb[0].mxu0
        %v900 = vadd.f32 %v679, %v899
        %v901 = vpop.f32.mrb[0].mxu0
        %v902 = vpop.f32.mrb[0].mxu0
        %v903 = vadd.f32 %v682, %v902
        %v904 = vpop.f32.mrb[0].mxu0
        %905 = vdwg.mxu0
        %v907 = vlaneseq
        %v908 = vshrl.u32 %v907, 7
        %v909 = vsub.s32 0, %v908
        %v910 = vrot.slane %v462, %v909
        %v912 = vadd.f32 %v780, %v910
        %v913 = vadd.f32 %v783, %v910
        %v914 = vadd.f32 %v788, %v910
        %v915 = vadd.f32 %v791, %v910
        %v916 = vadd.f32 %v796, %v910
        %v917 = vadd.f32 %v799, %v910
        %v918 = vadd.f32 %v804, %v910
        %v919 = vadd.f32 %v807, %v910
        %v920 = vadd.f32 %v812, %v910
        %v921 = vadd.f32 %v815, %v910
        %v922 = vadd.f32 %v820, %v910
        %v923 = vadd.f32 %v823, %v910
        %v924 = vadd.f32 %v828, %v910
        %v925 = vadd.f32 %v831, %v910
        %v926 = vadd.f32 %v836, %v910
        %v927 = vadd.f32 %v839, %v910
        %v928 = vadd.f32 %v844, %v910
        %v929 = vadd.f32 %v847, %v910
        %v930 = vadd.f32 %v852, %v910
        %v931 = vadd.f32 %v855, %v910
        %v932 = vadd.f32 %v860, %v910
        %v933 = vadd.f32 %v863, %v910
        %v934 = vadd.f32 %v868, %v910
        %v935 = vadd.f32 %v871, %v910
        %v936 = vadd.f32 %v876, %v910
        %v937 = vadd.f32 %v879, %v910
        %v938 = vadd.f32 %v884, %v910
        %v939 = vadd.f32 %v887, %v910
        %v940 = vadd.f32 %v892, %v910
        %v941 = vadd.f32 %v895, %v910
        %v942 = vadd.f32 %v900, %v910
        %v943 = vadd.f32 %v903, %v910
        %v944 = vmax.f32 %v912, 0.0
        %v945 = vmax.f32 %v913, 0.0
        %v946 = vmax.f32 %v914, 0.0
        %v947 = vmax.f32 %v915, 0.0
        %v948 = vmax.f32 %v916, 0.0
        %v949 = vmax.f32 %v917, 0.0
        %v950 = vmax.f32 %v918, 0.0
        %v951 = vmax.f32 %v919, 0.0
        %v952 = vmax.f32 %v920, 0.0
        %v953 = vmax.f32 %v921, 0.0
        %v954 = vmax.f32 %v922, 0.0
        %v955 = vmax.f32 %v923, 0.0
        %v956 = vmax.f32 %v924, 0.0
        %v957 = vmax.f32 %v925, 0.0
        %v958 = vmax.f32 %v926, 0.0
        %v959 = vmax.f32 %v927, 0.0
        %v960 = vmax.f32 %v928, 0.0
        %v961 = vmax.f32 %v929, 0.0
        %v962 = vmax.f32 %v930, 0.0
        %v963 = vmax.f32 %v931, 0.0
        %v964 = vmax.f32 %v932, 0.0
        %v965 = vmax.f32 %v933, 0.0
        %v966 = vmax.f32 %v934, 0.0
        %v967 = vmax.f32 %v935, 0.0
        %v968 = vmax.f32 %v936, 0.0
        %v969 = vmax.f32 %v937, 0.0
        %v970 = vmax.f32 %v938, 0.0
        %v971 = vmax.f32 %v939, 0.0
        %v972 = vmax.f32 %v940, 0.0
        %v973 = vmax.f32 %v941, 0.0
        %v974 = vmax.f32 %v942, 0.0
        %v975 = vmax.f32 %v943, 0.0
        %v976 = vpack.c.bf16 %v945, %v944
        %v977 = vpack.c.bf16 %v947, %v946
        %v978 = vpack.c.bf16 %v949, %v948
        %v979 = vpack.c.bf16 %v951, %v950
        %v980 = vpack.c.bf16 %v953, %v952
        %v981 = vpack.c.bf16 %v955, %v954
        %v982 = vpack.c.bf16 %v957, %v956
        %v983 = vpack.c.bf16 %v959, %v958
        %v984 = vpack.c.bf16 %v961, %v960
        %v985 = vpack.c.bf16 %v963, %v962
        %v986 = vpack.c.bf16 %v965, %v964
        %v987 = vpack.c.bf16 %v967, %v966
        %v988 = vpack.c.bf16 %v969, %v968
        %v989 = vpack.c.bf16 %v971, %v970
        %v990 = vpack.c.bf16 %v973, %v972
        %v991 = vpack.c.bf16 %v975, %v974
        %v992 = vld [vmem:[%s5] sm:$0xf]
        %v993 = vld [vmem:[%s5 + $0x4] sm:$0xf]
        %v994 = vld [vmem:[%s5 + $0x8] sm:$0xf]
        %v995 = vld [vmem:[%s5 + $0xc] sm:$0xf]
        %v996 = vld [vmem:[%s5 + $0x10] sm:$0xf]
        %v997 = vld [vmem:[%s5 + $0x14] sm:$0xf]
        %v998 = vld [vmem:[%s5 + $0x18] sm:$0xf]
        %v999 = vld [vmem:[%s5 + $0x1c] sm:$0xf]
        %v1000 = vld [vmem:[%s5 + $0x20] sm:$0xf]
        %v1001 = vld [vmem:[%s5 + $0x24] sm:$0xf]
        %v1002 = vld [vmem:[%s5 + $0x28] sm:$0xf]
        %v1003 = vld [vmem:[%s5 + $0x2c] sm:$0xf]
        %v1004 = vld [vmem:[%s5 + $0x30] sm:$0xf]
        %v1005 = vld [vmem:[%s5 + $0x34] sm:$0xf]
        %v1006 = vld [vmem:[%s5 + $0x38] sm:$0xf]
        %v1007 = vld [vmem:[%s5 + $0x3c] sm:$0xf]
        %v1008 = vld [vmem:[%s6] sm:$0x1]
        %v1010 = vlaneseq
        %v1011 = vshrl.u32 %v1010, 7
        %v1012 = vsub.s32 0, %v1011
        %v1013 = vrot.slane %v1008, %v1012
        %v1031 = vunpack.c.l.b16 %v992
        %v1032 = vunpack.c.l.b16 %v993
        %v1033 = vunpack.c.l.b16 %v994
        %v1034 = vunpack.c.l.b16 %v995
        %v1035 = vunpack.c.l.b16 %v996
        %v1036 = vunpack.c.l.b16 %v997
        %v1037 = vunpack.c.l.b16 %v998
        %v1038 = vunpack.c.l.b16 %v999
        %v1039 = vunpack.c.l.b16 %v1000
        %v1040 = vunpack.c.l.b16 %v1001
        %v1041 = vunpack.c.l.b16 %v1002
        %v1042 = vunpack.c.l.b16 %v1003
        %v1043 = vunpack.c.l.b16 %v1004
        %v1044 = vunpack.c.l.b16 %v1005
        %v1045 = vunpack.c.l.b16 %v1006
        %v1046 = vunpack.c.l.b16 %v1007
        %v1047 = vpack.c.b16 %v1032, %v1031
        %v1048 = vpack.c.b16 %v1034, %v1033
        %v1049 = vpack.c.b16 %v1036, %v1035
        %v1050 = vpack.c.b16 %v1038, %v1037
        %v1051 = vpack.c.b16 %v1040, %v1039
        %v1052 = vpack.c.b16 %v1042, %v1041
        %v1053 = vpack.c.b16 %v1044, %v1043
        %v1054 = vpack.c.b16 %v1046, %v1045
        %1063 = vmatprep.subr.bf16.mxu0 0
        %1064 = vmatpush1.bf16.msra.mxu0 %v1047
        %1065 = vmatprep.subr.bf16.mxu0 0
        %1066 = vmatpush1.bf16.msra.mxu0 %v1048
        %1067 = vmatprep.subr.bf16.mxu0 0
        %1068 = vmatpush1.bf16.msra.mxu0 %v1049
        %1069 = vmatprep.subr.bf16.mxu0 0
        %1070 = vmatpush1.bf16.msra.mxu0 %v1050
        %1071 = vmatprep.subr.bf16.mxu0 0
        %1072 = vmatpush1.bf16.msra.mxu0 %v1051
        %1073 = vmatprep.subr.bf16.mxu0 0
        %1074 = vmatpush1.bf16.msra.mxu0 %v1052
        %1075 = vmatprep.subr.bf16.mxu0 0
        %1076 = vmatpush1.bf16.msra.mxu0 %v1053
        %1077 = vmatprep.subr.bf16.mxu0 0
        %1078 = vmatpush1.bf16.msra.mxu0 %v1054
        %1079 = vmatprep.subr.bf16.mxu0 0
        %1080 = vmatpush1.bf16.msra.mxu0 0
        %1081 = vmatprep.subr.bf16.mxu0 0
        %1082 = vmatpush1.bf16.msra.mxu0 0
        %1083 = vmatprep.subr.bf16.mxu0 0
        %1084 = vmatpush1.bf16.msra.mxu0 0
        %1085 = vmatprep.subr.bf16.mxu0 0
        %1086 = vmatpush1.bf16.msra.mxu0 0
        %1087 = vmatprep.subr.bf16.mxu0 0
        %1088 = vmatpush1.bf16.msra.mxu0 0
        %1089 = vmatprep.subr.bf16.mxu0 0
        %1090 = vmatpush1.bf16.msra.mxu0 0
        %1091 = vmatprep.subr.bf16.mxu0 0
        %1092 = vmatpush1.bf16.msra.mxu0 0
        %1093 = vmatprep.subr.bf16.mxu0 0
        %1094 = vmatpush1.bf16.msra.mxu0 0
        %1095 = vmatprep.mubr.bf16.mxu0 0
        %1096 = vmatmul.mubr.bf16.gmra.mrb[0].mxu0 %v976
        %v1097 = vpop.f32.mrb[0].mxu0
        %v1098 = vadd.f32 %v1013, %v1097
        %v1099 = vpop.f32.mrb[0].mxu0
        %v1100 = vpop.f32.mrb[0].mxu0
        %v1101 = vadd.f32 %v1013, %v1100
        %v1102 = vpop.f32.mrb[0].mxu0
        %1103 = vmatprep.mubr.bf16.mxu0 0
        %1104 = vmatmul.mubr.bf16.gmra.mrb[0].mxu0 %v977
        %v1105 = vpop.f32.mrb[0].mxu0
        %v1106 = vadd.f32 %v1013, %v1105
        %v1107 = vpop.f32.mrb[0].mxu0
        %v1108 = vpop.f32.mrb[0].mxu0
        %v1109 = vadd.f32 %v1013, %v1108
        %v1110 = vpop.f32.mrb[0].mxu0
        %1111 = vmatprep.mubr.bf16.mxu0 0
        %1112 = vmatmul.mubr.bf16.gmra.mrb[0].mxu0 %v978
        %v1113 = vpop.f32.mrb[0].mxu0
        %v1114 = vadd.f32 %v1013, %v1113
        %v1115 = vpop.f32.mrb[0].mxu0
        %v1116 = vpop.f32.mrb[0].mxu0
        %v1117 = vadd.f32 %v1013, %v1116
        %v1118 = vpop.f32.mrb[0].mxu0
        %1119 = vmatprep.mubr.bf16.mxu0 0
        %1120 = vmatmul.mubr.bf16.gmra.mrb[0].mxu0 %v979
        %v1121 = vpop.f32.mrb[0].mxu0
        %v1122 = vadd.f32 %v1013, %v1121
        %v1123 = vpop.f32.mrb[0].mxu0
        %v1124 = vpop.f32.mrb[0].mxu0
        %v1125 = vadd.f32 %v1013, %v1124
        %v1126 = vpop.f32.mrb[0].mxu0
        %1127 = vmatprep.mubr.bf16.mxu0 0
        %1128 = vmatmul.mubr.bf16.gmra.mrb[0].mxu0 %v980
        %v1129 = vpop.f32.mrb[0].mxu0
        %v1130 = vadd.f32 %v1013, %v1129
        %v1131 = vpop.f32.mrb[0].mxu0
        %v1132 = vpop.f32.mrb[0].mxu0
        %v1133 = vadd.f32 %v1013, %v1132
        %v1134 = vpop.f32.mrb[0].mxu0
        %1135 = vmatprep.mubr.bf16.mxu0 0
        %1136 = vmatmul.mubr.bf16.gmra.mrb[0].mxu0 %v981
        %v1137 = vpop.f32.mrb[0].mxu0
        %v1138 = vadd.f32 %v1013, %v1137
        %v1139 = vpop.f32.mrb[0].mxu0
        %v1140 = vpop.f32.mrb[0].mxu0
        %v1141 = vadd.f32 %v1013, %v1140
        %v1142 = vpop.f32.mrb[0].mxu0
        %1143 = vmatprep.mubr.bf16.mxu0 0
        %1144 = vmatmul.mubr.bf16.gmra.mrb[0].mxu0 %v982
        %v1145 = vpop.f32.mrb[0].mxu0
        %v1146 = vadd.f32 %v1013, %v1145
        %v1147 = vpop.f32.mrb[0].mxu0
        %v1148 = vpop.f32.mrb[0].mxu0
        %v1149 = vadd.f32 %v1013, %v1148
        %v1150 = vpop.f32.mrb[0].mxu0
        %1151 = vmatprep.mubr.bf16.mxu0 0
        %1152 = vmatmul.mubr.bf16.gmra.mrb[0].mxu0 %v983
        %v1153 = vpop.f32.mrb[0].mxu0
        %v1154 = vadd.f32 %v1013, %v1153
        %v1155 = vpop.f32.mrb[0].mxu0
        %v1156 = vpop.f32.mrb[0].mxu0
        %v1157 = vadd.f32 %v1013, %v1156
        %v1158 = vpop.f32.mrb[0].mxu0
        %1159 = vmatprep.mubr.bf16.mxu0 0
        %1160 = vmatmul.mubr.bf16.gmra.mrb[0].mxu0 %v984
        %v1161 = vpop.f32.mrb[0].mxu0
        %v1162 = vadd.f32 %v1013, %v1161
        %v1163 = vpop.f32.mrb[0].mxu0
        %v1164 = vpop.f32.mrb[0].mxu0
        %v1165 = vadd.f32 %v1013, %v1164
        %v1166 = vpop.f32.mrb[0].mxu0
        %1167 = vmatprep.mubr.bf16.mxu0 0
        %1168 = vmatmul.mubr.bf16.gmra.mrb[0].mxu0 %v985
        %v1169 = vpop.f32.mrb[0].mxu0
        %v1170 = vadd.f32 %v1013, %v1169
        %v1171 = vpop.f32.mrb[0].mxu0
        %v1172 = vpop.f32.mrb[0].mxu0
        %v1173 = vadd.f32 %v1013, %v1172
        %v1174 = vpop.f32.mrb[0].mxu0
        %1175 = vmatprep.mubr.bf16.mxu0 0
        %1176 = vmatmul.mubr.bf16.gmra.mrb[0].mxu0 %v986
        %v1177 = vpop.f32.mrb[0].mxu0
        %v1178 = vadd.f32 %v1013, %v1177
        %v1179 = vpop.f32.mrb[0].mxu0
        %v1180 = vpop.f32.mrb[0].mxu0
        %v1181 = vadd.f32 %v1013, %v1180
        %v1182 = vpop.f32.mrb[0].mxu0
        %1183 = vmatprep.mubr.bf16.mxu0 0
        %1184 = vmatmul.mubr.bf16.gmra.mrb[0].mxu0 %v987
        %v1185 = vpop.f32.mrb[0].mxu0
        %v1186 = vadd.f32 %v1013, %v1185
        %v1187 = vpop.f32.mrb[0].mxu0
        %v1188 = vpop.f32.mrb[0].mxu0
        %v1189 = vadd.f32 %v1013, %v1188
        %v1190 = vpop.f32.mrb[0].mxu0
        %1191 = vmatprep.mubr.bf16.mxu0 0
        %1192 = vmatmul.mubr.bf16.gmra.mrb[0].mxu0 %v988
        %v1193 = vpop.f32.mrb[0].mxu0
        %v1194 = vadd.f32 %v1013, %v1193
        %v1195 = vpop.f32.mrb[0].mxu0
        %v1196 = vpop.f32.mrb[0].mxu0
        %v1197 = vadd.f32 %v1013, %v1196
        %v1198 = vpop.f32.mrb[0].mxu0
        %1199 = vmatprep.mubr.bf16.mxu0 0
        %1200 = vmatmul.mubr.bf16.gmra.mrb[0].mxu0 %v989
        %v1201 = vpop.f32.mrb[0].mxu0
        %v1202 = vadd.f32 %v1013, %v1201
        %v1203 = vpop.f32.mrb[0].mxu0
        %v1204 = vpop.f32.mrb[0].mxu0
        %v1205 = vadd.f32 %v1013, %v1204
        %v1206 = vpop.f32.mrb[0].mxu0
        %1207 = vmatprep.mubr.bf16.mxu0 0
        %1208 = vmatmul.mubr.bf16.gmra.mrb[0].mxu0 %v990
        %v1209 = vpop.f32.mrb[0].mxu0
        %v1210 = vadd.f32 %v1013, %v1209
        %v1211 = vpop.f32.mrb[0].mxu0
        %v1212 = vpop.f32.mrb[0].mxu0
        %v1213 = vadd.f32 %v1013, %v1212
        %v1214 = vpop.f32.mrb[0].mxu0
        %1215 = vmatprep.mubr.bf16.mxu0 0
        %1216 = vmatmul.mubr.bf16.gmra.mrb[0].mxu0 %v991
        %v1217 = vpop.f32.mrb[0].mxu0
        %v1218 = vadd.f32 %v1013, %v1217
        %v1219 = vpop.f32.mrb[0].mxu0
        %v1220 = vpop.f32.mrb[0].mxu0
        %v1221 = vadd.f32 %v1013, %v1220
        %v1222 = vpop.f32.mrb[0].mxu0
        %1223 = vdwg.mxu0
        %v1224 = vmax.f32 %v1098, 0.0
        %v1225 = vmax.f32 %v1101, 0.0
        %v1226 = vmax.f32 %v1106, 0.0
        %v1227 = vmax.f32 %v1109, 0.0
        %v1228 = vmax.f32 %v1114, 0.0
        %v1229 = vmax.f32 %v1117, 0.0
        %v1230 = vmax.f32 %v1122, 0.0
        %v1231 = vmax.f32 %v1125, 0.0
        %v1232 = vmax.f32 %v1130, 0.0
        %v1233 = vmax.f32 %v1133, 0.0
        %v1234 = vmax.f32 %v1138, 0.0
        %v1235 = vmax.f32 %v1141, 0.0
        %v1236 = vmax.f32 %v1146, 0.0
        %v1237 = vmax.f32 %v1149, 0.0
        %v1238 = vmax.f32 %v1154, 0.0
        %v1239 = vmax.f32 %v1157, 0.0
        %v1240 = vmax.f32 %v1162, 0.0
        %v1241 = vmax.f32 %v1165, 0.0
        %v1242 = vmax.f32 %v1170, 0.0
        %v1243 = vmax.f32 %v1173, 0.0
        %v1244 = vmax.f32 %v1178, 0.0
        %v1245 = vmax.f32 %v1181, 0.0
        %v1246 = vmax.f32 %v1186, 0.0
        %v1247 = vmax.f32 %v1189, 0.0
        %v1248 = vmax.f32 %v1194, 0.0
        %v1249 = vmax.f32 %v1197, 0.0
        %v1250 = vmax.f32 %v1202, 0.0
        %v1251 = vmax.f32 %v1205, 0.0
        %v1252 = vmax.f32 %v1210, 0.0
        %v1253 = vmax.f32 %v1213, 0.0
        %v1254 = vmax.f32 %v1218, 0.0
        %v1255 = vmax.f32 %v1221, 0.0
        %v1256 = vpack.c.bf16 %v1225, %v1224
        %v1257 = vpack.c.bf16 %v1227, %v1226
        %v1258 = vpack.c.bf16 %v1229, %v1228
        %v1259 = vpack.c.bf16 %v1231, %v1230
        %v1260 = vpack.c.bf16 %v1233, %v1232
        %v1261 = vpack.c.bf16 %v1235, %v1234
        %v1262 = vpack.c.bf16 %v1237, %v1236
        %v1263 = vpack.c.bf16 %v1239, %v1238
        %v1264 = vpack.c.bf16 %v1241, %v1240
        %v1265 = vpack.c.bf16 %v1243, %v1242
        %v1266 = vpack.c.bf16 %v1245, %v1244
        %v1267 = vpack.c.bf16 %v1247, %v1246
        %v1268 = vpack.c.bf16 %v1249, %v1248
        %v1269 = vpack.c.bf16 %v1251, %v1250
        %v1270 = vpack.c.bf16 %v1253, %v1252
        %v1271 = vpack.c.bf16 %v1255, %v1254
        %v1272 = vld [vmem:[%s7] sm:$0x1]
        %v1273 = vld [vmem:[#allocation2] sm:$0x1]
        %1275 = vset.pattern.permute.xlu0 0
        %1276 = vperm.xlu0 %1275, %v1273
        %v1277 = vpop.permute.xlu0 %1276
        %v1279 = vlaneseq
        %v1280 = vshrl.u32 %v1279, 7
        %v1281 = vsub.s32 0, %v1280
        %v1282 = vrot.slane %v1277, %v1281
        %1283 = vmatprep.subr.bf16.mxu0 0
        %1284 = vmatpush1.bf16.xpose.msra.mxu0 %v1256
        %1285 = vmatprep.subr.bf16.mxu0 0
        %1286 = vmatpush1.bf16.xpose.msra.mxu0 %v1257
        %1287 = vmatprep.subr.bf16.mxu0 0
        %1288 = vmatpush1.bf16.xpose.msra.mxu0 %v1258
        %1289 = vmatprep.subr.bf16.mxu0 0
        %1290 = vmatpush1.bf16.xpose.msra.mxu0 %v1259
        %1291 = vmatprep.subr.bf16.mxu0 0
        %1292 = vmatpush1.bf16.xpose.msra.mxu0 %v1260
        %1293 = vmatprep.subr.bf16.mxu0 0
        %1294 = vmatpush1.bf16.xpose.msra.mxu0 %v1261
        %1295 = vmatprep.subr.bf16.mxu0 0
        %1296 = vmatpush1.bf16.xpose.msra.mxu0 %v1262
        %1297 = vmatprep.subr.bf16.mxu0 0
        %1298 = vmatpush1.bf16.xpose.msra.mxu0 %v1263
        %1299 = vmatprep.subr.bf16.mxu0 0
        %1300 = vmatpush1.bf16.xpose.msra.mxu0 %v1264
        %1301 = vmatprep.subr.bf16.mxu0 0
        %1302 = vmatpush1.bf16.xpose.msra.mxu0 %v1265
        %1303 = vmatprep.subr.bf16.mxu0 0
        %1304 = vmatpush1.bf16.xpose.msra.mxu0 %v1266
        %1305 = vmatprep.subr.bf16.mxu0 0
        %1306 = vmatpush1.bf16.xpose.msra.mxu0 %v1267
        %1307 = vmatprep.subr.bf16.mxu0 0
        %1308 = vmatpush1.bf16.xpose.msra.mxu0 %v1268
        %1309 = vmatprep.subr.bf16.mxu0 0
        %1310 = vmatpush1.bf16.xpose.msra.mxu0 %v1269
        %1311 = vmatprep.subr.bf16.mxu0 0
        %1312 = vmatpush1.bf16.xpose.msra.mxu0 %v1270
        %1313 = vmatprep.subr.bf16.mxu0 0
        %1314 = vmatpush1.bf16.xpose.msra.mxu0 %v1271
        %1315 = vmatprep.mubr.bf16.mxu0 0
        %1316 = vmatmul.mubr.bf16.gmra.mrb[0].mxu0 %v1272
        %v1317 = vpop.f32.mrb[0].mxu0
        %v1318 = vadd.f32 %v1282, %v1317
        %v1319 = vpop.f32.mrb[0].mxu0
        %v1320 = vadd.f32 %v1282, %v1319
        %v1321 = vpop.f32.mrb[0].mxu0
        %v1322 = vpop.f32.mrb[0].mxu0
        %1323 = vdwg.mxu0
        %v1326 = vcombine.low %v1318, %v1320
        %v1328 = vunpack.c.l.s4 1966171168
        %v1329 = vunpack.c.0.s8 %v1328
        %v1330 = vlaneseq
        %v1331 = vshrl.u32 %v1330, 7
        %v1332 = vsub.s32 %v1329, %v1331
        %v1333 = vrot.slane %v1326, %v1332
        %v1335 = vunpack.c.l.s4 1966171168
        %v1336 = vunpack.c.0.s8 %v1335
        %v1337 = vlaneseq
        %v1338 = vshrl.u32 %v1337, 7
        %v1339 = vsub.s32 %v1336, %v1338
        %v1340 = vrot.slane %v1333, %v1339
        %v1342 = vlaneseq
        %vm1343 = vcmp.ge.s32.totalorder %v1342, 0
        %vm1344 = vcmp.lt.s32.totalorder %v1342, 256
        %vm1345 = vmand %vm1343, %vm1344
        %1346 = vst.msk [vmem:[%s344] sm:$0x3] %vm1345, %v1340
        %s1347 = sand.u32 %s232, 1
        %s1348 = scalar_lea.sflag [#allocation4], %s1347
        %s1349 = sand.u32 %s232, 1
        %s1350 = smul.addr %s1349, 2
        %s1351 = scalar_lea.vmem [#allocation3], %s1350
        // Predicated region
        $region57: #{tpu_custom_call.1} parent=55 // pred_check
          %p1352 = pneg %p242
        $region58: #{tpu_custom_call.1} parent=55 // pred_check_branch
          %1354 = sbr.rel (%p1352) target = $region60
        $region59: #{tpu_custom_call.1} parent=55 // pred_region
          %s1356 = ssub.s32 32, 32
          %1357 = vsyncadd %s1348, %s1356
          %s1358 = smul.addr %s25, 2
          %s1359 = smul.addr %s1358, 16
          %s1360 = scalar_lea.hbm %s9, %s1359
          %s1362 = sshll.u32 %s1351, 4
          %s1363 = int_to_ptr.vmem [resolvable:$true] %s1362
          %1365 = dma.vmem_to_hbm [thread:$0]  %s1363, 32, %s1360, %s1348
        $region60: #{tpu_custom_call.1} parent=55 // pred_fallthru
          _
      $region56: #{tpu_custom_call.1} parent=5 // pred_fallthru
        _
      %p1366 = scmp.le.s32.totalorder 2, %s20
      // Predicated region
      $region61: #{tpu_custom_call.1} parent=5 // pred_check
        %p1367 = pneg %p1366
      $region62: #{tpu_custom_call.1} parent=5 // pred_check_branch
        %1369 = sbr.rel (%p1367) target = $region64
      $region63: #{tpu_custom_call.1} parent=5 // pred_region
        %s1370 = ssub.s32 %s20, 2
        // Predicated region
        $region65: #{tpu_custom_call.1} parent=63 // pred_check
          %p1371 = pneg %p248
        $region66: #{tpu_custom_call.1} parent=63 // pred_check_branch
          %1373 = sbr.rel (%p1371) target = $region68
        $region67: #{tpu_custom_call.1} parent=63 // pred_region
          %s1374 = sand.u32 %s233, 1
          %s1375 = scalar_lea.sflag [#allocation4], %s1374
          %s1376 = sand.u32 %s233, 1
          %s1377 = smul.addr %s1376, 2
          %s1378 = scalar_lea.vmem [#allocation3], %s1377
          %1379 = dma.done %s1375, 32
        $region68: #{tpu_custom_call.1} parent=63 // pred_fallthru
          _
      $region64: #{tpu_custom_call.1} parent=5 // pred_fallthru
        _
    $region6: #{tpu_custom_call.1} parent=1 // loop_footer
      %s24 = sadd.s32 1, %s20
    $region7: #{tpu_custom_call.1} parent=1 // loop_footer_branch
      %19 = sbr.rel target = $region3
    $region8: #{tpu_custom_call.1} parent=1 // loop_exit
      _
    %1380 = vsyncpa [#allocation4], 1
    %s1381 = scalar_lea.sflag [#allocation4], 1
    %1382 = vsyncpa %s1381, 1

</llo_original>
